<compile_context>
chip_gen: v5e
topology: v5e:2x2
jax: 0.10.0
libtpu: 0.0.40
codegen_flags: <defaults>
</compile_context>

<pallas_src>
import math

import jax
import jax.numpy as jnp
from jax.experimental import pallas as pl
from jax.experimental.pallas import tpu as pltpu

_SHIFT = math.log(2.0)
_TARGET_BLOCK_BYTES = 4 << 20   # ~4 MiB per buffer
_VMEM_LIMIT_BYTES = 32 << 20    # >= v6e/v7x defaults, raises v5e's 16 MiB default


def _stable_shifted_softplus_f32(xf):
    # numerically stable softplus: max(x, 0) + log1p(exp(-|x|)), then shift
    return jnp.maximum(xf, 0.0) + jnp.log1p(jnp.exp(-jnp.abs(xf))) - _SHIFT


def _shifted_softplus_kernel(x_ref, o_ref):
    xf = x_ref[...].astype(jnp.float32)
    o_ref[...] = _stable_shifted_softplus_f32(xf).astype(o_ref.dtype)


def _choose_lane(n):
    """Widest lane width (multiple of 128) that divides n -> zero padding."""
    for lane in (1024, 512, 256, 128):
        if n % lane == 0:
            return lane
    raise ValueError("internal: _choose_lane requires n % 128 == 0")


def _round_up(a, m):
    return (a + m - 1) // m * m


def _run_slab(slab, out_dtype):
    rows, lane = slab.shape
    itemsize = jnp.dtype(out_dtype).itemsize
    # sublane packing multiple: 8 (f32), 16 (bf16/f16), 32 (int8/fp8)
    pack = 8 * max(1, 4 // itemsize)

    target_rows = max(pack, (_TARGET_BLOCK_BYTES // (lane * itemsize)) // pack * pack)
    if rows > target_rows:
        block_rows = target_rows
    elif rows >= 2 * pack:
        # Guarantee >= 2 grid steps so both v7x TensorCores get work.
        block_rows = _round_up(pl.cdiv(rows, 2), pack)
    else:
        block_rows = rows  # tiny input: single full-extent block
    grid = (pl.cdiv(rows, block_rows),)

    n = rows * lane
    cost = pl.CostEstimate(
        flops=3 * n,
        transcendentals=2 * n,
        bytes_accessed=2 * n * itemsize,
    )

    return pl.pallas_call(
        _shifted_softplus_kernel,
        out_shape=jax.ShapeDtypeStruct((rows, lane), out_dtype),
        grid_spec=pltpu.PrefetchScalarGridSpec(
            num_scalar_prefetch=0,
            grid=grid,
            in_specs=[pl.BlockSpec((block_rows, lane), lambda i: (i, 0))],
            out_specs=pl.BlockSpec((block_rows, lane), lambda i: (i, 0)),
        ),
        compiler_params=pltpu.CompilerParams(
            dimension_semantics=("parallel",),
            vmem_limit_bytes=_VMEM_LIMIT_BYTES,
        ),
        cost_estimate=cost,
    )(slab)


def shifted_softplus(x):
    orig_shape = x.shape
    orig_dtype = x.dtype
    n = x.size
    if n == 0:
        return x

    flat = x.reshape(-1)
    rem = n % 128
    n_bulk = n - rem

    if rem == 0:
        lane = _choose_lane(n)
        out = _run_slab(flat.reshape(n // lane, lane), orig_dtype)
        return out.reshape(orig_shape)

    # Ragged path (rare): kernel on 128-aligned bulk, <128-element tail in
    # plain JAX.  Avoids the old full-array pad + post-slice passes.
    tail_out = _stable_shifted_softplus_f32(
        flat[n_bulk:].astype(jnp.float32)).astype(orig_dtype)
    if n_bulk == 0:
        return tail_out.reshape(orig_shape)
    lane = _choose_lane(n_bulk)
    bulk_out = _run_slab(flat[:n_bulk].reshape(n_bulk // lane, lane), orig_dtype)
    return jnp.concatenate([bulk_out.reshape(-1), tail_out]).reshape(orig_shape)


if __name__ == "__main__":
    key = jax.random.PRNGKey(0)

    # Small shape consistent with the module's elementwise forward.
    x = jax.random.normal(key, (2, 4, 16, 16), dtype=jnp.float32)
    y = shifted_softplus(x)
    jax.block_until_ready(y)
    ref = jax.nn.softplus(x) - _SHIFT
    assert y.shape == x.shape and y.dtype == x.dtype
    assert jnp.allclose(y, ref, atol=1e-5, rtol=1e-5)

    # Larger 128-multiple shape: exercises the >=2-grid-step split.
    x1 = jax.random.normal(jax.random.PRNGKey(2), (8, 64, 256), dtype=jnp.float32)
    y1 = shifted_softplus(x1)
    jax.block_until_ready(y1)
    ref1 = jax.nn.softplus(x1) - _SHIFT
    assert y1.shape == x1.shape and y1.dtype == x1.dtype
    assert jnp.allclose(y1, ref1, atol=1e-5, rtol=1e-5)

    # Ragged size, bulk >= 128: exercises kernel-on-bulk + JAX tail path.
    x2 = jax.random.normal(jax.random.PRNGKey(1), (3, 7, 33), dtype=jnp.float32)
    y2 = shifted_softplus(x2)
    jax.block_until_ready(y2)
    ref2 = jax.nn.softplus(x2) - _SHIFT
    assert y2.shape == x2.shape and y2.dtype == x2.dtype
    assert jnp.allclose(y2, ref2, atol=1e-5, rtol=1e-5)

    # Tiny ragged size (< 128 elements): pure-JAX fallback path.
    x3 = jax.random.normal(jax.random.PRNGKey(3), (3, 5, 7), dtype=jnp.float32)
    y3 = shifted_softplus(x3)
    jax.block_until_ready(y3)
    ref3 = jax.nn.softplus(x3) - _SHIFT
    assert y3.shape == x3.shape and y3.dtype == x3.dtype
    assert jnp.allclose(y3, ref3, atol=1e-5, rtol=1e-5)

    print("KERNEL_OK")
</pallas_src>

<mosaic_0001>
module attributes {stable_mosaic.version = 11 : i64} {
  func.func @_shifted_softplus_kernel(%arg0: i32, %arg1: memref<2x1024xf32, #tpu.memory_space<vmem>>, %arg2: memref<2x1024xf32, #tpu.memory_space<vmem>>) attributes {dimension_semantics = [#tpu.dimension_semantics<parallel>], iteration_bounds = array<i64: 1>, scalar_prefetch = 0 : i64, scratch_operands = 0 : i64, tpu.core_type = #tpu.core_type<tc>, window_params = [{transform_indices = @transform_0, window_bounds = array<i64: 2, 1024>}, {transform_indices = @transform_1, window_bounds = array<i64: 2, 1024>}]} {
    %c0 = arith.constant 0 : index
    %c0_0 = arith.constant 0 : index
    %0 = vector.load %arg1[%c0, %c0_0] : memref<2x1024xf32, #tpu.memory_space<vmem>>, vector<2x1024xf32>
    %cst = arith.constant 0.000000e+00 : f32
    %1 = vector.broadcast %cst : f32 to vector<2x1024xf32>
    %2 = arith.maximumf %0, %1 : vector<2x1024xf32>
    %3 = math.absf %0 : vector<2x1024xf32>
    %cst_1 = arith.constant 0.000000e+00 : f32
    %4 = vector.broadcast %cst_1 : f32 to vector<2x1024xf32>
    %5 = arith.subf %4, %3 : vector<2x1024xf32>
    %6 = math.exp %5 : vector<2x1024xf32>
    %7 = math.log1p %6 : vector<2x1024xf32>
    %8 = arith.addf %2, %7 : vector<2x1024xf32>
    %cst_2 = arith.constant 0.693147182 : f32
    %9 = vector.broadcast %cst_2 : f32 to vector<2x1024xf32>
    %10 = arith.subf %8, %9 : vector<2x1024xf32>
    %c0_3 = arith.constant 0 : index
    %c0_4 = arith.constant 0 : index
    %11 = vector.load %arg2[%c0_3, %c0_4] : memref<2x1024xf32, #tpu.memory_space<vmem>>, vector<2x1024xf32>
    tpu.vector_store %arg2[%c0_3, %c0_4], %10 {strides = array<i32>} : memref<2x1024xf32, #tpu.memory_space<vmem>>, vector<2x1024xf32>,
    return
  }
  func.func @transform_0(%arg0: i32) -> (i32, i32) {
    %c0_i32 = arith.constant 0 : i32
    %c0_i32_0 = arith.constant 0 : i32
    return %arg0, %c0_i32 : i32, i32
  }
  func.func @transform_1(%arg0: i32) -> (i32, i32) {
    %c0_i32 = arith.constant 0 : i32
    %c0_i32_0 = arith.constant 0 : i32
    return %arg0, %c0_i32 : i32, i32
  }
}

</mosaic_0001>

<llo_original>
// kernel: tpu_custom_call.1
$region0: #{tpu_custom_call.1}
  #allocation0 [shape = 'u32[]', space=smem, size = 0x4, offset = 0x4, fixed_abs, tag = 'smem constant byte address 0x4 - core index']
  #allocation1 [shape = 'u32[72,128]{1,0:T(1,128)}', space=vmem, size = 0x9000, scoped, tag = 'internal scratch']
  %s0 = inlined_call_operand.hbm [shape: f32[2,1024], index: 0, kind: input, shape index: {}]
  %s1 = inlined_call_operand.hbm [shape: f32[2,1024], index: 1, kind: output, shape index: {}]
  %s2 = sld [smem:[#allocation0]]
  $region18: #{tpu_custom_call.1} parent=0
    _
  %s4 = ssub.s32 1, %s2
  %s5 = scalar_select 0, %s4, %s2
  $region1: #{tpu_custom_call.1} parent=0
    #allocation2 [shape = 'u8[8192]{0}', space=vmem, size = 0x2000, scoped, tag = 'input window, operand 0, single buffered']
    #allocation3 [shape = 's32[1]{0}', space=sflag, size = 0x4, scoped, tag = 'scoped memory for tpu_custom_call.1']
    #allocation4 [shape = 's32[1]{0}', space=sflag, size = 0x4, scoped, tag = 'scoped memory for tpu_custom_call.1']
    #allocation5 [shape = 'u8[8192]{0}', space=vmem, size = 0x2000, scoped, tag = 'output window, operand 0, single buffered']
    %6 = vsyncpa [#allocation3], 0
    %7 = vsyncpa [#allocation4], 0
    // Predicated region
    $region2: #{tpu_custom_call.1} parent=1 // pred_check
      _
    $region3: #{tpu_custom_call.1} parent=1 // pred_check_branch
      %9 = sbr.rel (0) target = $region5
    $region4: #{tpu_custom_call.1} parent=1 // pred_region
      %11 = vsyncadd [#allocation3], 0
      %s13 = sshll.u32 %s0, 4
      %s14 = int_to_ptr.hbm [resolvable:$true] %s13
      %s15 = sshll.u32 [#allocation2], 4
      %s16 = int_to_ptr.vmem [resolvable:$true] %s15
      %18 = dma.hbm_to_vmem [thread:$0]  %s14, 256, %s16, [#allocation3]
    $region5: #{tpu_custom_call.1} parent=1 // pred_fallthru
      _
    // Predicated region
    $region6: #{tpu_custom_call.1} parent=1 // pred_check
      _
    $region7: #{tpu_custom_call.1} parent=1 // pred_check_branch
      %20 = sbr.rel (0) target = $region9
    $region8: #{tpu_custom_call.1} parent=1 // pred_region
      %22 = dma.done [#allocation3], 256
    $region9: #{tpu_custom_call.1} parent=1 // pred_fallthru
      _
    %v23 = vld [vmem:[#allocation2] sm:$0xff]
    %v24 = vld [vmem:[#allocation2 + $0x8] sm:$0xff]
    %v25 = vmax.f32 %v23, 0.0
    %v26 = vmax.f32 %v24, 0.0
    %v27 = vand.u32 2147483647, %v23
    %v28 = vand.u32 2147483647, %v24
    %v29 = vsub.f32 0.0, %v27
    %v30 = vsub.f32 0.0, %v28
    %v31 = vmul.f32 %v29, 1.442695
    %v32 = vpow.pop %v31
    %v33 = vmul.f32 %v30, 1.442695
    %v34 = vpow.pop %v33
    %v35 = vadd.f32 %v32, 1.0
    %v36 = vlog2.pop %v35
    %v37 = vmul.f32 %v36, 0.6931472
    %v38 = vmul.f32 -0.5, %v32
    %v39 = vadd.f32 %v38, 1.0
    %v40 = vmul.f32 %v39, %v32
    %v41 = vand.u32 2147483647, %v32
    %vm42 = vcmp.lt.f32.partialorder %v41, 0.0004427343
    %v43 = vsel %vm42, %v40, %v37
    %v44 = vadd.f32 %v34, 1.0
    %v45 = vlog2.pop %v44
    %v46 = vmul.f32 %v45, 0.6931472
    %v47 = vmul.f32 -0.5, %v34
    %v48 = vadd.f32 %v47, 1.0
    %v49 = vmul.f32 %v48, %v34
    %v50 = vand.u32 2147483647, %v34
    %vm51 = vcmp.lt.f32.partialorder %v50, 0.0004427343
    %v52 = vsel %vm51, %v49, %v46
    %v53 = vadd.f32 %v25, %v43
    %v54 = vadd.f32 %v26, %v52
    %v55 = vsub.f32 %v53, 0.6931472
    %v56 = vsub.f32 %v54, 0.6931472
    %57 = vst [vmem:[#allocation5] sm:$0xff] %v55
    %58 = vst [vmem:[#allocation5 + $0x8] sm:$0xff] %v56
    // Predicated region
    $region10: #{tpu_custom_call.1} parent=1 // pred_check
      _
    $region11: #{tpu_custom_call.1} parent=1 // pred_check_branch
      %60 = sbr.rel (0) target = $region13
    $region12: #{tpu_custom_call.1} parent=1 // pred_region
      %62 = vsyncadd [#allocation4], 0
      %s64 = sshll.u32 [#allocation5], 4
      %s65 = int_to_ptr.vmem [resolvable:$true] %s64
      %s66 = sshll.u32 %s1, 4
      %s67 = int_to_ptr.hbm [resolvable:$true] %s66
      %69 = dma.vmem_to_hbm [thread:$0]  %s65, 256, %s67, [#allocation4]
    $region13: #{tpu_custom_call.1} parent=1 // pred_fallthru
      _
    // Predicated region
    $region14: #{tpu_custom_call.1} parent=1 // pred_check
      _
    $region15: #{tpu_custom_call.1} parent=1 // pred_check_branch
      %71 = sbr.rel (0) target = $region17
    $region16: #{tpu_custom_call.1} parent=1 // pred_region
      %73 = dma.done [#allocation4], 256
    $region17: #{tpu_custom_call.1} parent=1 // pred_fallthru
      _
    %74 = vsyncpa [#allocation3], 1
    %75 = vsyncpa [#allocation4], 1

</llo_original>
